<compile_context>
chip_gen: v7x
topology: tpu7x:2x2x1
jax: 0.10.0
libtpu: 0.0.40
codegen_flags: <defaults>
</compile_context>

<pallas_src>
import functools

import jax
import jax.numpy as jnp
from jax.experimental import pallas as pl
from jax.experimental.pallas import tpu as pltpu

_LANE = 128          # pad feature dims to multiples of this (lane-dense MXU/stores)
_SUBLANE_BF16 = 16   # bf16 vregs hold [16, 128]; align batch tiles to 16


def _round_up(n, m):
    return ((n + m - 1) // m) * m


_VMEM_BUDGET = None


def _vmem_budget_bytes():
    """Per-generation VMEM budget for resident weights + tiles (75% of physical)."""
    global _VMEM_BUDGET
    if _VMEM_BUDGET is None:
        try:
            cap = int(pltpu.get_tpu_info().vmem_capacity_bytes)
        except Exception:
            cap = 64 << 20          # conservative: v7x per-TC physical VMEM
        _VMEM_BUDGET = (cap * 3) // 4
    return _VMEM_BUDGET


# ----------------------------------------------------------------------------
# Kernel: shared input tile -> one or more fused dense chains ("heads").
# refs = (x_ref, w00, b00, w01, b01, ..., out0, out1, ...), head-major wb order.
# ----------------------------------------------------------------------------
def _stack_kernel(*refs, head_activations):
    n_heads = len(head_activations)
    x_ref = refs[0]
    out_refs = refs[len(refs) - n_heads:]
    wb_refs = refs[1:len(refs) - n_heads]

    x = x_ref[...]                      # read shared activation tile once
    pos = 0
    for h_idx, acts in enumerate(head_activations):
        h = x
        for act in acts:
            w = wb_refs[pos][...]       # bf16 [din_pad, dout_pad], VMEM-resident
            b = wb_refs[pos + 1][...]   # f32  [1, dout_pad]
            pos += 2
            # MXU matmul with f32 accumulation; epilogue stays f32 (v5e-safe).
            h = jnp.dot(h.astype(jnp.bfloat16), w,
                        preferred_element_type=jnp.float32)
            h = h + b
            if act == "relu":
                h = jnp.maximum(h, 0.0)
            elif act == "tanh":
                h = jnp.tanh(h)
            elif act != "none":
                raise ValueError(f"unknown activation {act!r}")
        out_refs[h_idx][...] = h.astype(out_refs[h_idx].dtype)


def _prepare_input(x, din_pad):
    """Feature-dim zero pad (required for K correctness) fused with bf16 cast.

    If the width is already lane-aligned we pass x through untouched and cast
    inside the kernel instead (saves one HBM round-trip on x)."""
    _, din = x.shape
    if din == din_pad:
        return x
    assert din_pad == _round_up(din, _LANE), "input width does not match chain"
    return jnp.pad(x.astype(jnp.bfloat16), ((0, 0), (0, din_pad - din)))


def _run_stack(x_in, head_weights, head_biases, head_activations, out_dtype):
    """Build + run one fused pallas_call for all heads sharing x_in."""
    B, din_pad = x_in.shape
    dout_pads = tuple(ws[-1].shape[1] for ws in head_weights)
    x_elem = x_in.dtype.itemsize
    out_elem = jnp.dtype(out_dtype).itemsize

    # --- batch tile: >= 2 blocks when B is large enough (v7x 2-TC sharding),
    # 16-aligned for bf16 sublane packing, capped at 512, shrunk to fit VMEM.
    if B >= 2 * _SUBLANE_BF16:
        tb = min(512, _round_up(-(-B // 2), _SUBLANE_BF16))
    else:
        tb = B                                  # single full-extent block

    budget = _vmem_budget_bytes()
    w_bytes = (sum(a.size * a.dtype.itemsize for ws in head_weights for a in ws)
               + sum(a.size * a.dtype.itemsize for bs in head_biases for a in bs))
    max_inter = max(a.shape[1] for ws in head_weights for a in ws)

    def est(tb_):
        nblk = pl.cdiv(B, tb_)
        xbuf = 3 if nblk >= 4 else 2
        return (w_bytes                                    # Buffered(1) weights
                + xbuf * tb_ * din_pad * x_elem            # pipelined x tiles
                + sum(2 * tb_ * dp * out_elem for dp in dout_pads)  # out tiles
                + 2 * tb_ * max_inter * 4)                 # f32 intermediates

    # If resident weights alone exceed the budget, shrinking tb can't help;
    # a further refinement would split the chain into multiple fused segments.
    while est(tb) > budget and tb >= 2 * _SUBLANE_BF16:
        tb = _round_up(tb // 2, _SUBLANE_BF16)

    num_blocks = pl.cdiv(B, tb)
    x_buffers = 3 if num_blocks >= 4 else 2     # deeper x pipeline on long grids (v5e BW)
    vmem_limit = int(min(max(est(tb) * 1.4 + (1 << 20), 8 << 20),
                         budget + (8 << 20)))

    # --- specs -----------------------------------------------------------
    in_specs = [pl.BlockSpec((tb, din_pad), lambda i: (i, 0),
                             pipeline_mode=pl.Buffered(buffer_count=x_buffers))]
    flat_wb = []
    for ws, bs in zip(head_weights, head_biases):
        for w, b in zip(ws, bs):
            # Constant index_map -> VMEM-resident; single buffer (no waste).
            in_specs.append(pl.BlockSpec(w.shape, lambda i: (0, 0),
                                         pipeline_mode=pl.Buffered(buffer_count=1)))
            in_specs.append(pl.BlockSpec(b.shape, lambda i: (0, 0),
                                         pipeline_mode=pl.Buffered(buffer_count=1)))
            flat_wb += [w, b]

    out_specs = tuple(pl.BlockSpec((tb, dp), lambda i: (i, 0)) for dp in dout_pads)
    out_shape = tuple(jax.ShapeDtypeStruct((B, dp), out_dtype) for dp in dout_pads)

    # --- advisory cost estimate -------------------------------------------
    flops = 0
    transcendentals = 0
    for ws, accs in zip(head_weights, head_activations):
        for w, act in zip(ws, accs):
            flops += 2 * B * w.shape[0] * w.shape[1]
            if act == "tanh":
                transcendentals += B * w.shape[1]
    bytes_accessed = (B * din_pad * x_elem + w_bytes
                      + sum(B * dp * out_elem for dp in dout_pads))
    cost = pl.CostEstimate(flops=flops, transcendentals=transcendentals,
                           bytes_accessed=bytes_accessed)

    kernel = functools.partial(_stack_kernel, head_activations=head_activations)
    ys = pl.pallas_call(
        kernel,
        out_shape=out_shape,
        grid=(num_blocks,),
        in_specs=in_specs,
        out_specs=out_specs,
        compiler_params=pltpu.CompilerParams(
            dimension_semantics=("parallel",),
            vmem_limit_bytes=vmem_limit),
        cost_estimate=cost,
    )(x_in, *flat_wb)
    if not isinstance(ys, (tuple, list)):
        ys = (ys,)
    return tuple(ys)


@functools.partial(jax.jit, static_argnames=("activations",))
def _segment_padded(x, weights, biases, *, activations):
    """Fused chain segment that returns its activation lane-padded in bf16,
    for zero-copy hand-off to the next fused segment (forward_all cache)."""
    x_in = _prepare_input(x, weights[0].shape[0])
    return _run_stack(x_in, (weights,), (biases,), (activations,), jnp.bfloat16)[0]


@functools.partial(jax.jit, static_argnames=("head_activations", "head_out_dims"))
def _heads_final(x, head_weights, head_biases, *, head_activations, head_out_dims):
    """One fused pallas_call for N heads sharing the same input; f32 outputs
    sliced back to their logical widths."""
    x_in = _prepare_input(x, head_weights[0][0].shape[0])
    ys = _run_stack(x_in, head_weights, head_biases, head_activations, jnp.float32)
    return tuple(y[:, :od] for y, od in zip(ys, head_out_dims))


# ----------------------------------------------------------------------------
# Submodel: a single dense layer whose forward is the fused Pallas kernel.
# ----------------------------------------------------------------------------
class DenseModel:
    def __init__(self, key, in_dim, out_dim, activation="none"):
        kw, kb = jax.random.split(key)
        scale = 1.0 / jnp.sqrt(jnp.float32(in_dim))
        w = jax.random.normal(kw, (in_dim, out_dim), jnp.float32) * scale
        b = jax.random.normal(kb, (1, out_dim), jnp.float32) * 0.01

        self.in_dim = in_dim
        self.out_dim = out_dim
        self.activation = activation

        # Lane-pad once at build time (zero rows/cols contribute nothing);
        # weights stored bf16 (MXU input), bias f32.
        din_p = _round_up(in_dim, _LANE)
        dout_p = _round_up(out_dim, _LANE)
        self.w_pad = (jnp.zeros((din_p, dout_p), jnp.bfloat16)
                      .at[:in_dim, :out_dim].set(w.astype(jnp.bfloat16)))
        self.b_pad = (jnp.zeros((1, dout_p), jnp.float32)
                      .at[:, :out_dim].set(b))

    def __call__(self, x, **kwargs):
        return _heads_final(x, ((self.w_pad,),), ((self.b_pad,),),
                            head_activations=((self.activation,),),
                            head_out_dims=(self.out_dim,))[0]


# ----------------------------------------------------------------------------
# StackedModel: same semantics as the PyTorch container.
# ----------------------------------------------------------------------------
class StackedModel:
    def __init__(self, models, stack_rules, name=None):
        self.name = name
        self.models = dict(models)
        self.stack_rules = dict(stack_rules)

    def _rule_layers(self, model_names):
        layers = [self.models[n] for n in model_names]
        assert layers, "empty rule segment"
        for prev, nxt in zip(layers[:-1], layers[1:]):
            assert prev.out_dim == nxt.in_dim
        return layers

    # Run a contiguous chain of submodels in ONE fused pallas_call.
    def _apply_models(self, x, model_names, **kwargs):
        # kwargs accepted for API parity with the PyTorch module.
        layers = self._rule_layers(model_names)
        return _heads_final(
            x,
            (tuple(m.w_pad for m in layers),),
            (tuple(m.b_pad for m in layers),),
            head_activations=(tuple(m.activation for m in layers),),
            head_out_dims=(layers[-1].out_dim,))[0]

    def _forward_by_rule(self, x, rule, **kwargs):
        return self._apply_models(x, tuple(rule), **kwargs)

    def forward(self, x, output_name, **kwargs):
        return self._forward_by_rule(x, self.stack_rules[output_name], **kwargs)

    __call__ = forward

    def forward_all(self, x, **kwargs):
        # TODO(synk): return_df=True pandas DataFrame conversion has no Pallas/JAX equivalent.
        rules = {name: tuple(rule) for name, rule in self.stack_rules.items()}

        prefix_count = {}
        for r in rules.values():
            for i in range(1, len(r) + 1):
                prefix_count[r[:i]] = prefix_count.get(r[:i], 0) + 1

        def lsp(r):  # longest prefix shared by >= 2 rules
            for i in range(len(r), 0, -1):
                if prefix_count[r[:i]] >= 2:
                    return r[:i]
            return ()

        # Phase 1: compute each needed shared prefix exactly once; cached
        # intermediates stay lane-padded bf16 (no slice / re-pad / f32
        # writeback at segment boundaries).
        cache = {(): x}
        targets = sorted({lsp(r) for r in rules.values()} - {()}, key=len)
        for tgt in targets:
            base = max((p for p in cache if p == tgt[:len(p)]), key=len)
            layers = self._rule_layers(tgt)[len(base):]
            cache[tgt] = _segment_padded(
                cache[base],
                tuple(m.w_pad for m in layers),
                tuple(m.b_pad for m in layers),
                activations=tuple(m.activation for m in layers))

        # Phase 2: horizontally fuse every rule hanging off the same cached
        # activation into ONE multi-head pallas_call (one read of the shared
        # activation, one launch).
        groups = {}
        for name, r in rules.items():
            groups.setdefault(lsp(r), []).append(name)

        outputs = {}
        for base, names in groups.items():
            src = cache[base]
            head_names, head_w, head_b, head_a, head_d = [], [], [], [], []
            for name in names:
                suffix = rules[name][len(base):]
                if not suffix:
                    if base:
                        od = self.models[base[-1]].out_dim
                        outputs[name] = src[:, :od].astype(jnp.float32)
                    else:
                        outputs[name] = x      # empty rule: identity
                    continue
                layers = [self.models[n] for n in suffix]
                head_names.append(name)
                head_w.append(tuple(m.w_pad for m in layers))
                head_b.append(tuple(m.b_pad for m in layers))
                head_a.append(tuple(m.activation for m in layers))
                head_d.append(layers[-1].out_dim)
            if head_names:
                ys = _heads_final(src, tuple(head_w), tuple(head_b),
                                  head_activations=tuple(head_a),
                                  head_out_dims=tuple(head_d))
                for name, y in zip(head_names, ys):
                    outputs[name] = y
        return outputs

    def predict(self, *args, **kwargs):
        # torch.no_grad equivalent: JAX builds no grads unless asked.
        return self.forward(*args, **kwargs)

    def predict_all(self, *args, **kwargs):
        return self.forward_all(*args, **kwargs)


if __name__ == "__main__":
    key = jax.random.PRNGKey(0)
    k_x, k_enc, k_a, k_b = jax.random.split(key, 4)

    batch, d_in, d_hidden, d_out_a, d_out_b = 8, 32, 64, 32, 16

    models = {
        "encoder": DenseModel(k_enc, d_in, d_hidden, activation="relu"),
        "head_a": DenseModel(k_a, d_hidden, d_out_a, activation="tanh"),
        "head_b": DenseModel(k_b, d_hidden, d_out_b, activation="none"),
    }
    stack_rules = {
        "out_a": ["encoder", "head_a"],
        "out_b": ["encoder", "head_b"],
    }
    stacked = StackedModel(models, stack_rules, name="demo_stacked")

    x = jax.random.normal(k_x, (batch, d_in), jnp.float32)

    # Single-output forward: one fused pallas_call for the whole rule.
    y_a = jax.block_until_ready(stacked.forward(x, "out_a"))
    y_b = jax.block_until_ready(stacked.forward(x, "out_b"))

    # All-outputs forward: shared "encoder" computed once (bf16 padded hand-off),
    # both heads horizontally fused into a single multi-head kernel.
    outs = stacked.forward_all(x)
    outs = {k: jax.block_until_ready(v) for k, v in outs.items()}

    assert y_a.shape == (batch, d_out_a)
    assert y_b.shape == (batch, d_out_b)
    assert outs["out_a"].shape == (batch, d_out_a)
    assert outs["out_b"].shape == (batch, d_out_b)
    assert bool(jnp.allclose(y_a, outs["out_a"], atol=1e-3, rtol=1e-3))
    assert bool(jnp.allclose(y_b, outs["out_b"], atol=1e-3, rtol=1e-3))

    # Sanity check vs. a plain-JAX reference with the same bf16-in /
    # f32-accumulate recipe (loose tolerance for bf16 rounding).
    def ref_chain(xv, rule):
        h = xv
        for name in rule:
            m = models[name]
            w = m.w_pad[: m.in_dim, : m.out_dim]
            b = m.b_pad[:, : m.out_dim]
            h = jnp.dot(h.astype(jnp.bfloat16), w,
                        preferred_element_type=jnp.float32) + b
            if m.activation == "relu":
                h = jnp.maximum(h, 0.0)
            elif m.activation == "tanh":
                h = jnp.tanh(h)
        return h

    ref_a = jax.block_until_ready(ref_chain(x, stack_rules["out_a"]))
    ref_b = jax.block_until_ready(ref_chain(x, stack_rules["out_b"]))
    assert bool(jnp.allclose(y_a, ref_a, atol=5e-2, rtol=5e-2))
    assert bool(jnp.allclose(y_b, ref_b, atol=5e-2, rtol=5e-2))

    print("KERNEL_OK")
</pallas_src>

<mosaic_0001>
module attributes {stable_mosaic.version = 11 : i64} {
  func.func @_stack_kernel(%arg0: i32, %arg1: memref<8x128xbf16, #tpu.memory_space<vmem>>, %arg2: memref<128x128xbf16, #tpu.memory_space<vmem>>, %arg3: memref<1x128xf32, #tpu.memory_space<vmem>>, %arg4: memref<128x128xbf16, #tpu.memory_space<vmem>>, %arg5: memref<1x128xf32, #tpu.memory_space<vmem>>, %arg6: memref<8x128xf32, #tpu.memory_space<vmem>>) attributes {dimension_semantics = [#tpu.dimension_semantics<parallel>], iteration_bounds = array<i64: 1>, scalar_prefetch = 0 : i64, scratch_operands = 0 : i64, tpu.core_type = #tpu.core_type<tc>, window_params = [{pipeline_mode = #tpu.pipeline_mode<double_buffered>, transform_indices = @transform_0, window_bounds = array<i64: 8, 128>}, {pipeline_mode = #tpu.pipeline_mode<synchronous>, transform_indices = @transform_1, window_bounds = array<i64: 128, 128>}, {pipeline_mode = #tpu.pipeline_mode<synchronous>, transform_indices = @transform_2, window_bounds = array<i64: 1, 128>}, {pipeline_mode = #tpu.pipeline_mode<synchronous>, transform_indices = @transform_3, window_bounds = array<i64: 128, 128>}, {pipeline_mode = #tpu.pipeline_mode<synchronous>, transform_indices = @transform_4, window_bounds = array<i64: 1, 128>}, {transform_indices = @transform_5, window_bounds = array<i64: 8, 128>}]} {
    %c0 = arith.constant 0 : index
    %c0_0 = arith.constant 0 : index
    %0 = vector.load %arg1[%c0, %c0_0] : memref<8x128xbf16, #tpu.memory_space<vmem>>, vector<8x128xbf16>
    %c0_1 = arith.constant 0 : index
    %c0_2 = arith.constant 0 : index
    %1 = vector.load %arg2[%c0_1, %c0_2] : memref<128x128xbf16, #tpu.memory_space<vmem>>, vector<128x128xbf16>
    %c0_3 = arith.constant 0 : index
    %c0_4 = arith.constant 0 : index
    %2 = vector.load %arg3[%c0_3, %c0_4] : memref<1x128xf32, #tpu.memory_space<vmem>>, vector<1x128xf32>
    %cst = arith.constant dense<0.000000e+00> : vector<8x128xf32>
    %3 = tpu.matmul %0, %1, %cst {dimension_numbers = #tpu.dot_dimension_numbers<[1], [0], [0], [1], [0, 0, 1, 1], [], []>} : vector<8x128xbf16>, vector<128x128xbf16>, vector<8x128xf32> -> vector<8x128xf32>
    %4 = vector.broadcast %2 : vector<1x128xf32> to vector<8x128xf32>
    %5 = arith.addf %3, %4 : vector<8x128xf32>
    %cst_5 = arith.constant 0.000000e+00 : f32
    %6 = vector.broadcast %cst_5 : f32 to vector<8x128xf32>
    %7 = arith.maximumf %5, %6 : vector<8x128xf32>
    %c0_6 = arith.constant 0 : index
    %c0_7 = arith.constant 0 : index
    %8 = vector.load %arg4[%c0_6, %c0_7] : memref<128x128xbf16, #tpu.memory_space<vmem>>, vector<128x128xbf16>
    %c0_8 = arith.constant 0 : index
    %c0_9 = arith.constant 0 : index
    %9 = vector.load %arg5[%c0_8, %c0_9] : memref<1x128xf32, #tpu.memory_space<vmem>>, vector<1x128xf32>
    %10 = arith.truncf %7 : vector<8x128xf32> to vector<8x128xbf16>
    %cst_10 = arith.constant dense<0.000000e+00> : vector<8x128xf32>
    %11 = tpu.matmul %10, %8, %cst_10 {dimension_numbers = #tpu.dot_dimension_numbers<[1], [0], [0], [1], [0, 0, 1, 1], [], []>} : vector<8x128xbf16>, vector<128x128xbf16>, vector<8x128xf32> -> vector<8x128xf32>
    %12 = vector.broadcast %9 : vector<1x128xf32> to vector<8x128xf32>
    %13 = arith.addf %11, %12 : vector<8x128xf32>
    %14 = math.tanh %13 : vector<8x128xf32>
    %c0_11 = arith.constant 0 : index
    %c0_12 = arith.constant 0 : index
    %15 = vector.load %arg6[%c0_11, %c0_12] : memref<8x128xf32, #tpu.memory_space<vmem>>, vector<8x128xf32>
    tpu.vector_store %arg6[%c0_11, %c0_12], %14 {strides = array<i32>} : memref<8x128xf32, #tpu.memory_space<vmem>>, vector<8x128xf32>,
    return
  }
  func.func @transform_0(%arg0: i32) -> (i32, i32) {
    %c0_i32 = arith.constant 0 : i32
    %c0_i32_0 = arith.constant 0 : i32
    return %arg0, %c0_i32 : i32, i32
  }
  func.func @transform_1(%arg0: i32) -> (i32, i32) {
    %c0_i32 = arith.constant 0 : i32
    %c0_i32_0 = arith.constant 0 : i32
    %c0_i32_1 = arith.constant 0 : i32
    return %c0_i32, %c0_i32_0 : i32, i32
  }
  func.func @transform_2(%arg0: i32) -> (i32, i32) {
    %c0_i32 = arith.constant 0 : i32
    %c0_i32_0 = arith.constant 0 : i32
    %c0_i32_1 = arith.constant 0 : i32
    return %c0_i32, %c0_i32_0 : i32, i32
  }
  func.func @transform_3(%arg0: i32) -> (i32, i32) {
    %c0_i32 = arith.constant 0 : i32
    %c0_i32_0 = arith.constant 0 : i32
    %c0_i32_1 = arith.constant 0 : i32
    return %c0_i32, %c0_i32_0 : i32, i32
  }
  func.func @transform_4(%arg0: i32) -> (i32, i32) {
    %c0_i32 = arith.constant 0 : i32
    %c0_i32_0 = arith.constant 0 : i32
    %c0_i32_1 = arith.constant 0 : i32
    return %c0_i32, %c0_i32_0 : i32, i32
  }
  func.func @transform_5(%arg0: i32) -> (i32, i32) {
    %c0_i32 = arith.constant 0 : i32
    %c0_i32_0 = arith.constant 0 : i32
    return %arg0, %c0_i32 : i32, i32
  }
}

</mosaic_0001>

<llo_original>
// kernel: _heads_final.1
$region0: #{_heads_final.1}
  #allocation0 [shape = 'u32[]', space=smem, size = 0x4, offset = 0x4, fixed_abs, tag = 'smem constant byte address 0x4 - core index']
  #allocation1 [shape = 'u32[144,128]{1,0:T(1,128)}', space=vmem, size = 0x12000, scoped, tag = 'internal scratch']
  %s0 = inlined_call_operand.vmem [shape: bf16[8,128], index: 0, kind: input, shape index: {}]
  %s1 = inlined_call_operand.hbm [shape: bf16[128,128], index: 1, kind: input, shape index: {}]
  %s2 = inlined_call_operand.vmem [shape: f32[1,128], index: 2, kind: input, shape index: {}]
  %s3 = inlined_call_operand.hbm [shape: bf16[128,128], index: 3, kind: input, shape index: {}]
  %s4 = inlined_call_operand.vmem [shape: f32[1,128], index: 4, kind: input, shape index: {}]
  %s5 = inlined_call_operand.hbm [shape: f32[8,128], index: 5, kind: output, shape index: {}]
  %s6 = sld [smem:[#allocation0]]
  $region38: #{_heads_final.1} parent=0
    _
  %s8 = ssub.s32 1, %s6
  %s9 = scalar_select 0, %s8, %s6
  $region1: #{_heads_final.1} parent=0
    #allocation2 [shape = 'u8[32768]{0}', space=vmem, size = 0x8000, scoped, tag = 'input window, operand 1, single buffered']
    #allocation3 [shape = 's32[1]{0}', space=sflag, size = 0x4, scoped, tag = 'scoped memory for _heads_final.1']
    #allocation4 [shape = 's32[1]{0}', space=sflag, size = 0x4, scoped, tag = 'scoped memory for _heads_final.1']
    #allocation5 [shape = 'u8[32768]{0}', space=vmem, size = 0x8000, scoped, tag = 'input window, operand 3, single buffered']
    #allocation6 [shape = 's32[1]{0}', space=sflag, size = 0x4, scoped, tag = 'scoped memory for _heads_final.1']
    #allocation7 [shape = 'u8[4096]{0}', space=vmem, size = 0x1000, scoped, tag = 'output window, operand 0, single buffered']
    %10 = vsyncpa [#allocation3], 0
    %11 = vsyncpa [#allocation6], 0
    %12 = vsyncpa [#allocation4], 0
    // Predicated region
    $region2: #{_heads_final.1} parent=1 // pred_check
      _
    $region3: #{_heads_final.1} parent=1 // pred_check_branch
      %14 = sbr.rel (0) target = $region5
    $region4: #{_heads_final.1} parent=1 // pred_region
      _
    $region5: #{_heads_final.1} parent=1 // pred_fallthru
      _
    // Predicated region
    $region6: #{_heads_final.1} parent=1 // pred_check
      _
    $region7: #{_heads_final.1} parent=1 // pred_check_branch
      %16 = sbr.rel (0) target = $region9
    $region8: #{_heads_final.1} parent=1 // pred_region
      %s18 = ssub.s32 1024, 1024
      %19 = vsyncadd [#allocation3], %s18
      %s20 = sshll.u32 [#allocation2], 4
      %s21 = int_to_ptr.vmem [resolvable:$true] %s20
      %26 = dma.hbm_to_vmem [thread:$0]  %s1, 1024, %s21, [#allocation3], 64, 64, 4
    $region9: #{_heads_final.1} parent=1 // pred_fallthru
      _
    // Predicated region
    $region10: #{_heads_final.1} parent=1 // pred_check
      _
    $region11: #{_heads_final.1} parent=1 // pred_check_branch
      %28 = sbr.rel (0) target = $region13
    $region12: #{_heads_final.1} parent=1 // pred_region
      _
    $region13: #{_heads_final.1} parent=1 // pred_fallthru
      _
    // Predicated region
    $region14: #{_heads_final.1} parent=1 // pred_check
      _
    $region15: #{_heads_final.1} parent=1 // pred_check_branch
      %30 = sbr.rel (0) target = $region17
    $region16: #{_heads_final.1} parent=1 // pred_region
      %s32 = ssub.s32 1024, 1024
      %33 = vsyncadd [#allocation6], %s32
      %s34 = sshll.u32 [#allocation5], 4
      %s35 = int_to_ptr.vmem [resolvable:$true] %s34
      %40 = dma.hbm_to_vmem [thread:$0]  %s3, 1024, %s35, [#allocation6], 64, 64, 4
    $region17: #{_heads_final.1} parent=1 // pred_fallthru
      _
    // Predicated region
    $region18: #{_heads_final.1} parent=1 // pred_check
      _
    $region19: #{_heads_final.1} parent=1 // pred_check_branch
      %42 = sbr.rel (0) target = $region21
    $region20: #{_heads_final.1} parent=1 // pred_region
      _
    $region21: #{_heads_final.1} parent=1 // pred_fallthru
      _
    // Predicated region
    $region22: #{_heads_final.1} parent=1 // pred_check
      _
    $region23: #{_heads_final.1} parent=1 // pred_check_branch
      %44 = sbr.rel (0) target = $region25
    $region24: #{_heads_final.1} parent=1 // pred_region
      %45 = dma.done [#allocation3], 1024
    $region25: #{_heads_final.1} parent=1 // pred_fallthru
      _
    // Predicated region
    $region26: #{_heads_final.1} parent=1 // pred_check
      _
    $region27: #{_heads_final.1} parent=1 // pred_check_branch
      %47 = sbr.rel (0) target = $region29
    $region28: #{_heads_final.1} parent=1 // pred_region
      %48 = dma.done [#allocation6], 1024
    $region29: #{_heads_final.1} parent=1 // pred_fallthru
      _
    %v50 = vld [vmem:[%s0] sm:$0xf]
    %v51 = vld [vmem:[#allocation2] sm:$0xf]
    %v52 = vld [vmem:[#allocation2 + $0x4] sm:$0xf]
    %v53 = vld [vmem:[#allocation2 + $0x8] sm:$0xf]
    %v54 = vld [vmem:[#allocation2 + $0xc] sm:$0xf]
    %v55 = vld [vmem:[#allocation2 + $0x10] sm:$0xf]
    %v56 = vld [vmem:[#allocation2 + $0x14] sm:$0xf]
    %v57 = vld [vmem:[#allocation2 + $0x18] sm:$0xf]
    %v58 = vld [vmem:[#allocation2 + $0x1c] sm:$0xf]
    %v59 = vld [vmem:[#allocation2 + $0x20] sm:$0xf]
    %v60 = vld [vmem:[#allocation2 + $0x24] sm:$0xf]
    %v61 = vld [vmem:[#allocation2 + $0x28] sm:$0xf]
    %v62 = vld [vmem:[#allocation2 + $0x2c] sm:$0xf]
    %v63 = vld [vmem:[#allocation2 + $0x30] sm:$0xf]
    %v64 = vld [vmem:[#allocation2 + $0x34] sm:$0xf]
    %v65 = vld [vmem:[#allocation2 + $0x38] sm:$0xf]
    %v66 = vld [vmem:[#allocation2 + $0x3c] sm:$0xf]
    %v67 = vld [vmem:[%s2] sm:$0x1]
    %v69 = vlaneseq
    %v70 = vshrl.u32 %v69, 7
    %v71 = vsub.s32 0, %v70
    %v72 = vrot.slane %v67, %v71
    %v90 = vunpack.c.l.b16 %v51
    %v91 = vunpack.c.l.b16 %v52
    %v92 = vunpack.c.l.b16 %v53
    %v93 = vunpack.c.l.b16 %v54
    %v94 = vunpack.c.l.b16 %v55
    %v95 = vunpack.c.l.b16 %v56
    %v96 = vunpack.c.l.b16 %v57
    %v97 = vunpack.c.l.b16 %v58
    %v98 = vunpack.c.l.b16 %v59
    %v99 = vunpack.c.l.b16 %v60
    %v100 = vunpack.c.l.b16 %v61
    %v101 = vunpack.c.l.b16 %v62
    %v102 = vunpack.c.l.b16 %v63
    %v103 = vunpack.c.l.b16 %v64
    %v104 = vunpack.c.l.b16 %v65
    %v105 = vunpack.c.l.b16 %v66
    %v106 = vpack.c.b16 %v91, %v90
    %v107 = vpack.c.b16 %v93, %v92
    %v108 = vpack.c.b16 %v95, %v94
    %v109 = vpack.c.b16 %v97, %v96
    %v110 = vpack.c.b16 %v99, %v98
    %v111 = vpack.c.b16 %v101, %v100
    %v112 = vpack.c.b16 %v103, %v102
    %v113 = vpack.c.b16 %v105, %v104
    %122 = vmatprep.subr.bf16.mxu0 0
    %123 = vmatpush1.bf16.msra.mxu0 %v106
    %124 = vmatprep.subr.bf16.mxu0 0
    %125 = vmatpush1.bf16.msra.mxu0 %v107
    %126 = vmatprep.subr.bf16.mxu0 0
    %127 = vmatpush1.bf16.msra.mxu0 %v108
    %128 = vmatprep.subr.bf16.mxu0 0
    %129 = vmatpush1.bf16.msra.mxu0 %v109
    %130 = vmatprep.subr.bf16.mxu0 0
    %131 = vmatpush1.bf16.msra.mxu0 %v110
    %132 = vmatprep.subr.bf16.mxu0 0
    %133 = vmatpush1.bf16.msra.mxu0 %v111
    %134 = vmatprep.subr.bf16.mxu0 0
    %135 = vmatpush1.bf16.msra.mxu0 %v112
    %136 = vmatprep.subr.bf16.mxu0 0
    %137 = vmatpush1.bf16.msra.mxu0 %v113
    %138 = vmatprep.subr.bf16.mxu0 0
    %139 = vmatpush1.bf16.msra.mxu0 0
    %140 = vmatprep.subr.bf16.mxu0 0
    %141 = vmatpush1.bf16.msra.mxu0 0
    %142 = vmatprep.subr.bf16.mxu0 0
    %143 = vmatpush1.bf16.msra.mxu0 0
    %144 = vmatprep.subr.bf16.mxu0 0
    %145 = vmatpush1.bf16.msra.mxu0 0
    %146 = vmatprep.subr.bf16.mxu0 0
    %147 = vmatpush1.bf16.msra.mxu0 0
    %148 = vmatprep.subr.bf16.mxu0 0
    %149 = vmatpush1.bf16.msra.mxu0 0
    %150 = vmatprep.subr.bf16.mxu0 0
    %151 = vmatpush1.bf16.msra.mxu0 0
    %152 = vmatprep.subr.bf16.mxu0 0
    %153 = vmatpush1.bf16.msra.mxu0 0
    %154 = vmatprep.mubr.bf16.mxu0 0
    %155 = vmatmul.mubr.bf16.gmra.mrb[0].mxu0 %v50
    %v156 = vpop.f32.mrb[0].mxu0
    %v157 = vadd.f32 %v72, %v156
    %v158 = vpop.f32.mrb[0].mxu0
    %v159 = vpop.f32.mrb[0].mxu0
    %v160 = vpop.f32.mrb[0].mxu0
    %161 = vdwg.mxu0
    %v162 = vmax.f32 %v157, 0.0
    %v163 = vld [vmem:[#allocation5] sm:$0xf]
    %v164 = vld [vmem:[#allocation5 + $0x4] sm:$0xf]
    %v165 = vld [vmem:[#allocation5 + $0x8] sm:$0xf]
    %v166 = vld [vmem:[#allocation5 + $0xc] sm:$0xf]
    %v167 = vld [vmem:[#allocation5 + $0x10] sm:$0xf]
    %v168 = vld [vmem:[#allocation5 + $0x14] sm:$0xf]
    %v169 = vld [vmem:[#allocation5 + $0x18] sm:$0xf]
    %v170 = vld [vmem:[#allocation5 + $0x1c] sm:$0xf]
    %v171 = vld [vmem:[#allocation5 + $0x20] sm:$0xf]
    %v172 = vld [vmem:[#allocation5 + $0x24] sm:$0xf]
    %v173 = vld [vmem:[#allocation5 + $0x28] sm:$0xf]
    %v174 = vld [vmem:[#allocation5 + $0x2c] sm:$0xf]
    %v175 = vld [vmem:[#allocation5 + $0x30] sm:$0xf]
    %v176 = vld [vmem:[#allocation5 + $0x34] sm:$0xf]
    %v177 = vld [vmem:[#allocation5 + $0x38] sm:$0xf]
    %v178 = vld [vmem:[#allocation5 + $0x3c] sm:$0xf]
    %v179 = vld [vmem:[%s4] sm:$0x1]
    %v180 = vpack.c.bf16 %v162, %v162
    %v182 = vlaneseq
    %v183 = vshrl.u32 %v182, 7
    %v184 = vsub.s32 0, %v183
    %v185 = vrot.slane %v179, %v184
    %v203 = vunpack.c.l.b16 %v163
    %v204 = vunpack.c.l.b16 %v164
    %v205 = vunpack.c.l.b16 %v165
    %v206 = vunpack.c.l.b16 %v166
    %v207 = vunpack.c.l.b16 %v167
    %v208 = vunpack.c.l.b16 %v168
    %v209 = vunpack.c.l.b16 %v169
    %v210 = vunpack.c.l.b16 %v170
    %v211 = vunpack.c.l.b16 %v171
    %v212 = vunpack.c.l.b16 %v172
    %v213 = vunpack.c.l.b16 %v173
    %v214 = vunpack.c.l.b16 %v174
    %v215 = vunpack.c.l.b16 %v175
    %v216 = vunpack.c.l.b16 %v176
    %v217 = vunpack.c.l.b16 %v177
    %v218 = vunpack.c.l.b16 %v178
    %v219 = vpack.c.b16 %v204, %v203
    %v220 = vpack.c.b16 %v206, %v205
    %v221 = vpack.c.b16 %v208, %v207
    %v222 = vpack.c.b16 %v210, %v209
    %v223 = vpack.c.b16 %v212, %v211
    %v224 = vpack.c.b16 %v214, %v213
    %v225 = vpack.c.b16 %v216, %v215
    %v226 = vpack.c.b16 %v218, %v217
    %235 = vmatprep.subr.bf16.mxu0 0
    %236 = vmatpush1.bf16.msra.mxu0 %v219
    %237 = vmatprep.subr.bf16.mxu0 0
    %238 = vmatpush1.bf16.msra.mxu0 %v220
    %239 = vmatprep.subr.bf16.mxu0 0
    %240 = vmatpush1.bf16.msra.mxu0 %v221
    %241 = vmatprep.subr.bf16.mxu0 0
    %242 = vmatpush1.bf16.msra.mxu0 %v222
    %243 = vmatprep.subr.bf16.mxu0 0
    %244 = vmatpush1.bf16.msra.mxu0 %v223
    %245 = vmatprep.subr.bf16.mxu0 0
    %246 = vmatpush1.bf16.msra.mxu0 %v224
    %247 = vmatprep.subr.bf16.mxu0 0
    %248 = vmatpush1.bf16.msra.mxu0 %v225
    %249 = vmatprep.subr.bf16.mxu0 0
    %250 = vmatpush1.bf16.msra.mxu0 %v226
    %251 = vmatprep.subr.bf16.mxu0 0
    %252 = vmatpush1.bf16.msra.mxu0 0
    %253 = vmatprep.subr.bf16.mxu0 0
    %254 = vmatpush1.bf16.msra.mxu0 0
    %255 = vmatprep.subr.bf16.mxu0 0
    %256 = vmatpush1.bf16.msra.mxu0 0
    %257 = vmatprep.subr.bf16.mxu0 0
    %258 = vmatpush1.bf16.msra.mxu0 0
    %259 = vmatprep.subr.bf16.mxu0 0
    %260 = vmatpush1.bf16.msra.mxu0 0
    %261 = vmatprep.subr.bf16.mxu0 0
    %262 = vmatpush1.bf16.msra.mxu0 0
    %263 = vmatprep.subr.bf16.mxu0 0
    %264 = vmatpush1.bf16.msra.mxu0 0
    %265 = vmatprep.subr.bf16.mxu0 0
    %266 = vmatpush1.bf16.msra.mxu0 0
    %267 = vmatprep.mubr.bf16.mxu0 0
    %268 = vmatmul.mubr.bf16.gmra.mrb[0].mxu0 %v180
    %v269 = vpop.f32.mrb[0].mxu0
    %v270 = vadd.f32 %v185, %v269
    %v271 = vpop.f32.mrb[0].mxu0
    %v272 = vpop.f32.mrb[0].mxu0
    %v273 = vpop.f32.mrb[0].mxu0
    %274 = vdwg.mxu0
    %v275 = vtanh.pop %v270
    %276 = vst [vmem:[#allocation7] sm:$0xff] %v275
    // Predicated region
    $region30: #{_heads_final.1} parent=1 // pred_check
      _
    $region31: #{_heads_final.1} parent=1 // pred_check_branch
      %278 = sbr.rel (0) target = $region33
    $region32: #{_heads_final.1} parent=1 // pred_region
      %s280 = ssub.s32 128, 128
      %281 = vsyncadd [#allocation4], %s280
      %s283 = sshll.u32 [#allocation7], 4
      %s284 = int_to_ptr.vmem [resolvable:$true] %s283
      %286 = dma.vmem_to_hbm [thread:$0]  %s284, 128, %s5, [#allocation4]
    $region33: #{_heads_final.1} parent=1 // pred_fallthru
      _
    // Predicated region
    $region34: #{_heads_final.1} parent=1 // pred_check
      _
    $region35: #{_heads_final.1} parent=1 // pred_check_branch
      %288 = sbr.rel (0) target = $region37
    $region36: #{_heads_final.1} parent=1 // pred_region
      %289 = dma.done [#allocation4], 128
    $region37: #{_heads_final.1} parent=1 // pred_fallthru
      _
    %290 = vsyncpa [#allocation3], 1
    %291 = vsyncpa [#allocation6], 1
    %292 = vsyncpa [#allocation4], 1

</llo_original>
